<compile_context>
chip_gen: v7x
topology: tpu7x:2x2x1
jax: 0.10.0
libtpu: 0.0.40
codegen_flags: <defaults>
</compile_context>

<pallas_src>
import numpy as np
import jax
import jax.numpy as jnp
from jax.experimental import pallas as pl
from jax.experimental.pallas import tpu as pltpu

# ----------------------------- problem sizes --------------------------------
T = 8            # time steps per mini-batch
N = 4            # num_envs
TN = T * N       # flattened rows
D = 32           # observation feature dim (stand-in for policy trunk output)
A = 6            # number of discrete actions
ENTROPY_COEF = 0.01
OUT_LANES = 128  # lane-dense single output row

# packed-input lane layout
BIAS_LANE = D          # ones column (bias fold)
ACT_LANE = D + 1       # actions, stored as f32 (exact for 0..A-1)
INF_LANE = D + 2       # inflection weight
MASK_LO = D + 3        # per-env selection mask, N lanes
D_AUG = D + 3 + N      # total packed width (= 39)

# Static per-env mask, hoisted out of the kernel body: row t*N + n belongs to
# env n, i.e. env(row) = row % N.  mask[row, n'] = 1.0 iff row % N == n'.
_ENV_MASK_NP = (np.arange(TN)[:, None] % N == np.arange(N)[None, :]).astype(np.float32)


# ------------------------------- kernel -------------------------------------
def mil_loss_kernel(packed_ref, w_aug_ref, out_ref):
    packed = packed_ref[...]                                             # (TN, D_AUG)

    # --- learner head: logits = [obs | 1] @ [W ; b]  (MXU, f32 accumulate) ---
    # Aux/mask lanes multiply zero rows of w_aug, so they do not perturb it.
    logits = jnp.dot(packed, w_aug_ref[...],
                     preferred_element_type=jnp.float32)                 # (TN, A)

    # --- cross entropy per (t, n) row (reduction='none') ---------------------
    m = jnp.max(logits, axis=-1, keepdims=True)
    lse = m + jnp.log(jnp.sum(jnp.exp(logits - m), axis=-1, keepdims=True))  # (TN,1)

    acts = packed[:, ACT_LANE:ACT_LANE + 1].astype(jnp.int32)            # (TN,1)
    lane_a = jax.lax.broadcasted_iota(jnp.int32, logits.shape, 1)        # (TN, A)
    onehot = (lane_a == acts).astype(jnp.float32)
    picked = jnp.sum(logits * onehot, axis=-1, keepdims=True)            # (TN,1)
    ce = lse - picked                                                    # (TN,1)

    # --- categorical distribution entropy (dist_entropy) ---------------------
    p = jnp.exp(logits - lse)
    ent_row = lse - jnp.sum(p * logits, axis=-1, keepdims=True)          # (TN,1)
    dist_entropy = jnp.sum(ent_row, keepdims=True) * (1.0 / TN)          # (1,1)

    # --- inflection-weighted time reduction per env, mean over envs ----------
    # env_mask is the hoisted compile-time constant packed into the aux lanes;
    # a single sublane (axis-0) reduce per side yields per-env sums.
    inf = packed[:, INF_LANE:INF_LANE + 1]                               # (TN,1)
    env_mask = packed[:, MASK_LO:MASK_LO + N]                            # (TN,N)
    numer = jnp.sum(env_mask * (inf * ce), axis=0, keepdims=True)        # (1,N)
    denom = jnp.sum(env_mask * inf, axis=0, keepdims=True)               # (1,N)
    action_loss_term = jnp.sum(numer / denom, keepdims=True) * (1.0 / N)  # (1,1)

    total = action_loss_term - ENTROPY_COEF * dist_entropy               # (1,1)

    # --- single lane-dense output: [total, action_loss_term, dist_entropy] ---
    lane_o = jax.lax.broadcasted_iota(jnp.int32, (1, OUT_LANES), 1)
    out_ref[...] = (jnp.where(lane_o == 0, total, 0.0)
                    + jnp.where(lane_o == 1, action_loss_term, 0.0)
                    + jnp.where(lane_o == 2, dist_entropy, 0.0))         # (1,128)


# ------------------------------- wrapper -------------------------------------
@jax.jit
def mil_calculate_loss(obs, w, b, actions, inflection, hidden_states):
    """Returns (total_loss, rnn_hidden_states, dist_entropy, action_loss_term)."""
    # Pack all per-row data into ONE lane-dense input (single DMA), and fold
    # the bias + zero rows for the aux lanes into ONE weight input.
    ones_col = jnp.ones((TN, 1), jnp.float32)
    acts_f32 = actions.astype(jnp.float32)                       # exact for 0..A-1
    env_mask = jnp.asarray(_ENV_MASK_NP)                         # compile-time const
    packed = jnp.concatenate([obs, ones_col, acts_f32, inflection, env_mask],
                             axis=1)                             # (TN, D_AUG)
    w_aug = jnp.concatenate([w, b, jnp.zeros((2 + N, A), jnp.float32)],
                            axis=0)                              # (D_AUG, A)

    vmem_spec = pl.BlockSpec(memory_space=pltpu.MemorySpace.VMEM)

    # Truthful cost: tiny matmul + O(TN*A) elementwise; TN*A-ish transcendentals;
    # <10 KiB of traffic.  Keeps XLA from over-scheduling this epilogue.
    cost = pl.CostEstimate(
        flops=2 * TN * D_AUG * A + 16 * TN * A,
        transcendentals=2 * TN * A,
        bytes_accessed=(packed.size + w_aug.size + OUT_LANES) * 4,
    )

    out = pl.pallas_call(
        mil_loss_kernel,
        in_specs=[vmem_spec, vmem_spec],
        out_specs=vmem_spec,
        out_shape=jax.ShapeDtypeStruct((1, OUT_LANES), jnp.float32),
        cost_estimate=cost,
    )(packed, w_aug)

    # Single slice readback; everything stays inside this one jitted executable.
    res = out[0, :3]
    total = res[0]
    action_loss_term = res[1]
    dist_entropy = res[2]

    # TODO(synk): the recurrent learner (actor_critic / MAML clone) is an
    # external module; its hidden state is passed through unchanged here.
    rnn_hidden_states = hidden_states
    return total, rnn_hidden_states, dist_entropy, action_loss_term


# ------------------------------ reference ------------------------------------
def reference(obs, w, b, actions, inflection):
    logits = obs @ w + b                                                  # (TN, A)
    logp = jax.nn.log_softmax(logits, axis=-1)
    ce = -jnp.take_along_axis(logp, actions, axis=-1)                     # (TN,1)
    ent = -jnp.sum(jnp.exp(logp) * logp, axis=-1).mean()
    ce_tn = ce.reshape(T, N, 1)
    inf_tn = inflection.reshape(T, N, 1)
    action_loss_term = ((inf_tn * ce_tn).sum(0) / inf_tn.sum(0)).mean()
    total = action_loss_term - ENTROPY_COEF * ent
    return total, ent, action_loss_term


# -------------------------------- main ----------------------------------------
if __name__ == "__main__":
    key = jax.random.PRNGKey(0)
    k_obs, k_w, k_b, k_act, k_inf, k_hid = jax.random.split(key, 6)

    obs = jax.random.normal(k_obs, (TN, D), jnp.float32)
    w = jax.random.normal(k_w, (D, A), jnp.float32) * 0.1      # deterministic "policy head"
    b = jax.random.normal(k_b, (1, A), jnp.float32) * 0.01
    actions = jax.random.randint(k_act, (TN, 1), 0, A, jnp.int32)
    # NOTE: inflection weights are strictly positive here; a zero per-env sum
    # would give inf/NaN (same behavior as the PyTorch original).
    inflection = jax.random.uniform(k_inf, (TN, 1), jnp.float32, 0.5, 2.0)
    hidden_states = jax.random.normal(k_hid, (N, 1, 64), jnp.float32)

    total, hid, ent, aloss = mil_calculate_loss(obs, w, b, actions, inflection,
                                                hidden_states)
    jax.block_until_ready((total, hid, ent, aloss))

    ref_total, ref_ent, ref_aloss = reference(obs, w, b, actions, inflection)
    assert jnp.allclose(total, ref_total, atol=1e-4, rtol=1e-4), (total, ref_total)
    assert jnp.allclose(ent, ref_ent, atol=1e-4, rtol=1e-4), (ent, ref_ent)
    assert jnp.allclose(aloss, ref_aloss, atol=1e-4, rtol=1e-4), (aloss, ref_aloss)

    print("KERNEL_OK")
</pallas_src>

<mosaic_0001>
module attributes {stable_mosaic.version = 11 : i64} {
  func.func @mil_loss_kernel(%arg0: memref<32x39xf32, #tpu.memory_space<vmem>>, %arg1: memref<39x6xf32, #tpu.memory_space<vmem>>, %arg2: memref<1x128xf32, #tpu.memory_space<vmem>>) attributes {dimension_semantics = [], scalar_prefetch = 0 : i64, scratch_operands = 0 : i64, tpu.core_type = #tpu.core_type<tc>} {
    %c0 = arith.constant 0 : index
    %c0_0 = arith.constant 0 : index
    %0 = vector.load %arg0[%c0, %c0_0] : memref<32x39xf32, #tpu.memory_space<vmem>>, vector<32x39xf32>
    %c0_1 = arith.constant 0 : index
    %c0_2 = arith.constant 0 : index
    %1 = vector.load %arg1[%c0_1, %c0_2] : memref<39x6xf32, #tpu.memory_space<vmem>>, vector<39x6xf32>
    %cst = arith.constant dense<0.000000e+00> : vector<32x6xf32>
    %2 = tpu.matmul %0, %1, %cst {dimension_numbers = #tpu.dot_dimension_numbers<[1], [0], [0], [1], [0, 0, 1, 1], [], []>} : vector<32x39xf32>, vector<39x6xf32>, vector<32x6xf32> -> vector<32x6xf32>
    %cst_3 = arith.constant dense<0xFF800000> : vector<32xf32>
    %3 = vector.multi_reduction <maximumf>, %2, %cst_3 [1] : vector<32x6xf32> to vector<32xf32>
    %4 = vector.shape_cast %3 : vector<32xf32> to vector<32x1xf32>
    %5 = vector.broadcast %4 : vector<32x1xf32> to vector<32x6xf32>
    %6 = arith.subf %2, %5 : vector<32x6xf32>
    %7 = math.exp %6 : vector<32x6xf32>
    %cst_4 = arith.constant dense<0.000000e+00> : vector<32xf32>
    %8 = vector.multi_reduction <add>, %7, %cst_4 [1] : vector<32x6xf32> to vector<32xf32>
    %9 = vector.shape_cast %8 : vector<32xf32> to vector<32x1xf32>
    %10 = math.log %9 : vector<32x1xf32>
    %11 = arith.addf %4, %10 : vector<32x1xf32>
    %12 = vector.extract_strided_slice %0 {offsets = [0, 33], sizes = [32, 1], strides = [1, 1]} : vector<32x39xf32> to vector<32x1xf32>
    %13 = arith.fptosi %12 : vector<32x1xf32> to vector<32x1xi32>
    %14 = tpu.iota {dimensions = array<i32: 1>} : vector<32x6xi32>
    %15 = vector.broadcast %13 : vector<32x1xi32> to vector<32x6xi32>
    %16 = arith.cmpi eq, %14, %15 : vector<32x6xi32>
    %17 = arith.extui %16 : vector<32x6xi1> to vector<32x6xi32>
    %18 = arith.sitofp %17 : vector<32x6xi32> to vector<32x6xf32>
    %19 = arith.mulf %2, %18 : vector<32x6xf32>
    %cst_5 = arith.constant dense<0.000000e+00> : vector<32xf32>
    %20 = vector.multi_reduction <add>, %19, %cst_5 [1] : vector<32x6xf32> to vector<32xf32>
    %21 = vector.shape_cast %20 : vector<32xf32> to vector<32x1xf32>
    %22 = arith.subf %11, %21 : vector<32x1xf32>
    %23 = vector.broadcast %11 : vector<32x1xf32> to vector<32x6xf32>
    %24 = arith.subf %2, %23 : vector<32x6xf32>
    %25 = math.exp %24 : vector<32x6xf32>
    %26 = arith.mulf %25, %2 : vector<32x6xf32>
    %cst_6 = arith.constant dense<0.000000e+00> : vector<32xf32>
    %27 = vector.multi_reduction <add>, %26, %cst_6 [1] : vector<32x6xf32> to vector<32xf32>
    %28 = vector.shape_cast %27 : vector<32xf32> to vector<32x1xf32>
    %29 = arith.subf %11, %28 : vector<32x1xf32>
    %30 = vector.shape_cast %29 : vector<32x1xf32> to vector<1x32x1xf32>
    %cst_7 = arith.constant dense<0.000000e+00> : vector<1xf32>
    %31 = vector.multi_reduction <add>, %30, %cst_7 [1, 2] : vector<1x32x1xf32> to vector<1xf32>
    %32 = vector.shape_cast %31 : vector<1xf32> to vector<1x1x1xf32>
    %33 = vector.extract %32[0, 0, 0] : f32 from vector<1x1x1xf32>
    %34 = vector.broadcast %33 : f32 to vector<1x1xf32>
    %cst_8 = arith.constant 3.125000e-02 : f32
    %35 = vector.broadcast %cst_8 : f32 to vector<1x1xf32>
    %36 = arith.mulf %34, %35 : vector<1x1xf32>
    %37 = vector.extract_strided_slice %0 {offsets = [0, 34], sizes = [32, 1], strides = [1, 1]} : vector<32x39xf32> to vector<32x1xf32>
    %38 = vector.extract_strided_slice %0 {offsets = [0, 35], sizes = [32, 4], strides = [1, 1]} : vector<32x39xf32> to vector<32x4xf32>
    %39 = arith.mulf %37, %22 : vector<32x1xf32>
    %40 = vector.broadcast %39 : vector<32x1xf32> to vector<32x4xf32>
    %41 = arith.mulf %38, %40 : vector<32x4xf32>
    %cst_9 = arith.constant dense<0.000000e+00> : vector<4xf32>
    %42 = vector.multi_reduction <add>, %41, %cst_9 [0] : vector<32x4xf32> to vector<4xf32>
    %43 = vector.shape_cast %42 : vector<4xf32> to vector<1x4xf32>
    %44 = vector.broadcast %37 : vector<32x1xf32> to vector<32x4xf32>
    %45 = arith.mulf %38, %44 : vector<32x4xf32>
    %cst_10 = arith.constant dense<0.000000e+00> : vector<4xf32>
    %46 = vector.multi_reduction <add>, %45, %cst_10 [0] : vector<32x4xf32> to vector<4xf32>
    %47 = vector.shape_cast %46 : vector<4xf32> to vector<1x4xf32>
    %48 = arith.divf %43, %47 : vector<1x4xf32>
    %49 = vector.shape_cast %48 : vector<1x4xf32> to vector<1x1x4xf32>
    %cst_11 = arith.constant dense<0.000000e+00> : vector<1xf32>
    %50 = vector.multi_reduction <add>, %49, %cst_11 [1, 2] : vector<1x1x4xf32> to vector<1xf32>
    %51 = vector.shape_cast %50 : vector<1xf32> to vector<1x1x1xf32>
    %52 = vector.extract %51[0, 0, 0] : f32 from vector<1x1x1xf32>
    %53 = vector.broadcast %52 : f32 to vector<1x1xf32>
    %cst_12 = arith.constant 2.500000e-01 : f32
    %54 = vector.broadcast %cst_12 : f32 to vector<1x1xf32>
    %55 = arith.mulf %53, %54 : vector<1x1xf32>
    %cst_13 = arith.constant 0.00999999977 : f32
    %56 = vector.broadcast %cst_13 : f32 to vector<1x1xf32>
    %57 = arith.mulf %56, %36 : vector<1x1xf32>
    %58 = arith.subf %55, %57 : vector<1x1xf32>
    %59 = tpu.iota {dimensions = array<i32: 1>} : vector<1x128xi32>
    %c0_i32 = arith.constant 0 : i32
    %60 = vector.broadcast %c0_i32 : i32 to vector<1x128xi32>
    %61 = arith.cmpi eq, %59, %60 : vector<1x128xi32>
    %cst_14 = arith.constant 0.000000e+00 : f32
    %62 = vector.shape_cast %58 : vector<1x1xf32> to vector<1x1xf32>
    %63 = vector.broadcast %62 : vector<1x1xf32> to vector<1x128xf32>
    %64 = vector.broadcast %cst_14 : f32 to vector<1x128xf32>
    %65 = arith.select %61, %63, %64 : vector<1x128xi1>, vector<1x128xf32>
    %c1_i32 = arith.constant 1 : i32
    %66 = vector.broadcast %c1_i32 : i32 to vector<1x128xi32>
    %67 = arith.cmpi eq, %59, %66 : vector<1x128xi32>
    %cst_15 = arith.constant 0.000000e+00 : f32
    %68 = vector.shape_cast %55 : vector<1x1xf32> to vector<1x1xf32>
    %69 = vector.broadcast %68 : vector<1x1xf32> to vector<1x128xf32>
    %70 = vector.broadcast %cst_15 : f32 to vector<1x128xf32>
    %71 = arith.select %67, %69, %70 : vector<1x128xi1>, vector<1x128xf32>
    %72 = arith.addf %65, %71 : vector<1x128xf32>
    %c2_i32 = arith.constant 2 : i32
    %73 = vector.broadcast %c2_i32 : i32 to vector<1x128xi32>
    %74 = arith.cmpi eq, %59, %73 : vector<1x128xi32>
    %cst_16 = arith.constant 0.000000e+00 : f32
    %75 = vector.shape_cast %36 : vector<1x1xf32> to vector<1x1xf32>
    %76 = vector.broadcast %75 : vector<1x1xf32> to vector<1x128xf32>
    %77 = vector.broadcast %cst_16 : f32 to vector<1x128xf32>
    %78 = arith.select %74, %76, %77 : vector<1x128xi1>, vector<1x128xf32>
    %79 = arith.addf %72, %78 : vector<1x128xf32>
    %c0_17 = arith.constant 0 : index
    %c0_18 = arith.constant 0 : index
    %80 = vector.load %arg2[%c0_17, %c0_18] : memref<1x128xf32, #tpu.memory_space<vmem>>, vector<1x128xf32>
    tpu.vector_store %arg2[%c0_17, %c0_18], %79 {strides = array<i32>} : memref<1x128xf32, #tpu.memory_space<vmem>>, vector<1x128xf32>,
    return
  }
}

</mosaic_0001>

<llo_original>
// kernel: mil_calculate_loss.1
$region0: #{mil_calculate_loss.1}
  #allocation0 [shape = 'u32[]', space=smem, size = 0x4, offset = 0x4, fixed_abs, tag = 'smem constant byte address 0x4 - core index']
  #allocation1 [shape = 'u32[144,128]{1,0:T(1,128)}', space=vmem, size = 0x12000, scoped, tag = 'internal scratch']
  %s0 = inlined_call_operand.vmem [shape: f32[32,39], index: 0, kind: input, shape index: {}]
  %s1 = inlined_call_operand.vmem [shape: f32[39,6], index: 1, kind: input, shape index: {}]
  %s2 = inlined_call_operand.vmem [shape: f32[1,128], index: 2, kind: output, shape index: {}]
  %s3 = sld [smem:[#allocation0]]
  $region18: #{mil_calculate_loss.1} parent=0
    _
  %s5 = ssub.s32 1, %s3
  %s6 = scalar_select 0, %s5, %s3
  // Predicated region
  $region2: #{mil_calculate_loss.1} parent=0 // pred_check
    _
  $region3: #{mil_calculate_loss.1} parent=0 // pred_check_branch
    %8 = sbr.rel (0) target = $region5
  $region4: #{mil_calculate_loss.1} parent=0 // pred_region
    _
  $region5: #{mil_calculate_loss.1} parent=0 // pred_fallthru
    _
  // Predicated region
  $region6: #{mil_calculate_loss.1} parent=0 // pred_check
    _
  $region7: #{mil_calculate_loss.1} parent=0 // pred_check_branch
    %10 = sbr.rel (0) target = $region9
  $region8: #{mil_calculate_loss.1} parent=0 // pred_region
    _
  $region9: #{mil_calculate_loss.1} parent=0 // pred_fallthru
    _
  %v11 = vld [vmem:[%s0] sm:$0xff]
  %v12 = vld [vmem:[%s0 + $0x8] sm:$0xff]
  %v13 = vld [vmem:[%s0 + $0x10] sm:$0xff]
  %v14 = vld [vmem:[%s0 + $0x18] sm:$0xff]
  %v15 = vld [vmem:[%s1] sm:$0xff]
  %v16 = vld [vmem:[%s1 + $0x8] sm:$0xff]
  %v17 = vld [vmem:[%s1 + $0x10] sm:$0xff]
  %v18 = vld [vmem:[%s1 + $0x18] sm:$0xff]
  %v19 = vld [vmem:[%s1 + $0x20] sm:$0x7f]
  %vm20 = vcmask 318464
  %v22 = vsel %vm20, %v11, 0
  %v25 = vsel %vm20, %v12, 0
  %v28 = vsel %vm20, %v13, 0
  %v31 = vsel %vm20, %v14, 0
  %vm33 = vcmask 1046528
  %v35 = vsel %vm33, %v19, 0
  %37 = vmatprep.subr.mxu0 0.0
  %38 = vmatpush1.msra.mxu0 %v15
  %39 = vmatprep.subr.mxu0 0.0
  %40 = vmatpush1.msra.mxu0 %v16
  %41 = vmatprep.subr.mxu0 0.0
  %42 = vmatpush1.msra.mxu0 %v17
  %43 = vmatprep.subr.mxu0 0.0
  %44 = vmatpush1.msra.mxu0 %v18
  %45 = vmatprep.subr.mxu0 0.0
  %46 = vmatpush1.msra.mxu0 %v35
  %47 = vmatprep.subr.mxu0 0.0
  %48 = vmatpush1.msra.mxu0 0.0
  %49 = vmatprep.subr.mxu0 0.0
  %50 = vmatpush1.msra.mxu0 0.0
  %51 = vmatprep.subr.mxu0 0.0
  %52 = vmatpush1.msra.mxu0 0.0
  %53 = vmatprep.subr.mxu0 0.0
  %54 = vmatpush1.msra.mxu0 0.0
  %55 = vmatprep.subr.mxu0 0.0
  %56 = vmatpush1.msra.mxu0 0.0
  %57 = vmatprep.subr.mxu0 0.0
  %58 = vmatpush1.msra.mxu0 0.0
  %59 = vmatprep.subr.mxu0 0.0
  %60 = vmatpush1.msra.mxu0 0.0
  %61 = vmatprep.subr.mxu0 0.0
  %62 = vmatpush1.msra.mxu0 0.0
  %63 = vmatprep.subr.mxu0 0.0
  %64 = vmatpush1.msra.mxu0 0.0
  %65 = vmatprep.subr.mxu0 0.0
  %66 = vmatpush1.msra.mxu0 0.0
  %67 = vmatprep.subr.mxu0 0.0
  %68 = vmatpush1.msra.mxu0 0.0
  %69 = vmatprep.subr.mxu0 0.0
  %70 = vmatpush1.msra.mxu0 0.0
  %71 = vmatprep.subr.mxu0 0.0
  %72 = vmatpush1.msra.mxu0 0.0
  %73 = vmatprep.subr.mxu0 0.0
  %74 = vmatpush1.msra.mxu0 0.0
  %75 = vmatprep.subr.mxu0 0.0
  %76 = vmatpush1.msra.mxu0 0.0
  %77 = vmatprep.subr.mxu0 0.0
  %78 = vmatpush1.msra.mxu0 0.0
  %79 = vmatprep.subr.mxu0 0.0
  %80 = vmatpush1.msra.mxu0 0.0
  %81 = vmatprep.subr.mxu0 0.0
  %82 = vmatpush1.msra.mxu0 0.0
  %83 = vmatprep.subr.mxu0 0.0
  %84 = vmatpush1.msra.mxu0 0.0
  %85 = vmatprep.subr.mxu0 0.0
  %86 = vmatpush1.msra.mxu0 0.0
  %87 = vmatprep.subr.mxu0 0.0
  %88 = vmatpush1.msra.mxu0 0.0
  %89 = vmatprep.subr.mxu0 0.0
  %90 = vmatpush1.msra.mxu0 0.0
  %91 = vmatprep.subr.mxu0 0.0
  %92 = vmatpush1.msra.mxu0 0.0
  %93 = vmatprep.subr.mxu0 0.0
  %94 = vmatpush1.msra.mxu0 0.0
  %95 = vmatprep.subr.mxu0 0.0
  %96 = vmatpush1.msra.mxu0 0.0
  %97 = vmatprep.subr.mxu0 0.0
  %98 = vmatpush1.msra.mxu0 0.0
  %99 = vmatprep.subr.mxu0 0.0
  %100 = vmatpush1.msra.mxu0 0.0
  %101 = vmatprep.mubr.f32.mxu0 0.0
  %102 = vmatmul.mubr.f32.gmra.mrb[0].mxu0 %v22
  %v103 = vpop.f32.mrb[0].mxu0
  %v104 = vadd.f32 0.0, %v103
  %v105 = vpop.f32.mrb[0].mxu0
  %106 = vmatprep.mubr.f32.mxu0 0.0
  %107 = vmatmul.mubr.f32.gmra.mrb[0].mxu0 %v25
  %v108 = vpop.f32.mrb[0].mxu0
  %v109 = vadd.f32 0.0, %v108
  %v110 = vpop.f32.mrb[0].mxu0
  %111 = vmatprep.mubr.f32.mxu0 0.0
  %112 = vmatmul.mubr.f32.gmra.mrb[0].mxu0 %v28
  %v113 = vpop.f32.mrb[0].mxu0
  %v114 = vadd.f32 0.0, %v113
  %v115 = vpop.f32.mrb[0].mxu0
  %116 = vmatprep.mubr.f32.mxu0 0.0
  %117 = vmatmul.mubr.f32.gmra.mrb[0].mxu0 %v31
  %v118 = vpop.f32.mrb[0].mxu0
  %v119 = vadd.f32 0.0, %v118
  %v120 = vpop.f32.mrb[0].mxu0
  %121 = vdwg.mxu0
  %vm122 = vcmask 48128
  %v123 = vsel %vm122, %v104, -inf
  %124 = vmax.xlane.f32.xlu0 %v123
  %v125 = vpop.xlane.xlu0 %124
  %v126 = vsel %vm122, %v109, -inf
  %127 = vmax.xlane.f32.xlu0 %v126
  %v128 = vpop.xlane.xlu0 %127
  %v129 = vsel %vm122, %v114, -inf
  %130 = vmax.xlane.f32.xlu0 %v129
  %v131 = vpop.xlane.xlu0 %130
  %v132 = vsel %vm122, %v119, -inf
  %133 = vmax.xlane.f32.xlu0 %v132
  %v134 = vpop.xlane.xlu0 %133
  %v135 = vsub.f32 %v104, %v125
  %v136 = vsub.f32 %v109, %v128
  %v137 = vsub.f32 %v114, %v131
  %v138 = vsub.f32 %v119, %v134
  %v139 = vmul.f32 %v135, 1.442695
  %v140 = vpow.pop %v139
  %v141 = vmul.f32 %v136, 1.442695
  %v142 = vpow.pop %v141
  %v143 = vmul.f32 %v137, 1.442695
  %v144 = vpow.pop %v143
  %v145 = vmul.f32 %v138, 1.442695
  %v146 = vpow.pop %v145
  %v147 = vsel %vm122, %v140, 0.0
  %148 = vadd.xlane.f32.xlu0 %v147
  %v149 = vpop.xlane.xlu0 %148
  %v150 = vsel %vm122, %v142, 0.0
  %151 = vadd.xlane.f32.xlu0 %v150
  %v152 = vpop.xlane.xlu0 %151
  %v153 = vsel %vm122, %v144, 0.0
  %154 = vadd.xlane.f32.xlu0 %v153
  %v155 = vpop.xlane.xlu0 %154
  %v156 = vsel %vm122, %v146, 0.0
  %157 = vadd.xlane.f32.xlu0 %v156
  %v158 = vpop.xlane.xlu0 %157
  %v159 = vlog2.pop %v149
  %v160 = vmul.f32 %v159, 0.6931472
  %v161 = vlog2.pop %v152
  %v162 = vmul.f32 %v161, 0.6931472
  %v163 = vlog2.pop %v155
  %v164 = vmul.f32 %v163, 0.6931472
  %v165 = vlog2.pop %v158
  %v166 = vmul.f32 %v165, 0.6931472
  %v167 = vadd.f32 %v125, %v160
  %v168 = vadd.f32 %v128, %v162
  %v169 = vadd.f32 %v131, %v164
  %v170 = vadd.f32 %v134, %v166
  %v171 = vcvt.f32.s32.to.zero.pseudo %v11
  %v172 = vcvt.f32.s32.to.zero.pseudo %v12
  %v173 = vcvt.f32.s32.to.zero.pseudo %v13
  %v174 = vcvt.f32.s32.to.zero.pseudo %v14
  %v175 = vlaneseq
  %v176 = vand.u32 %v175, 127
  %177 = vset.pattern.permute.xlu0 33
  %178 = vperm.xlu0 %177, %v171
  %v179 = vpop.permute.xlu0 %178
  %180 = vset.pattern.permute.xlu0 33
  %181 = vperm.xlu0 %180, %v172
  %v182 = vpop.permute.xlu0 %181
  %183 = vset.pattern.permute.xlu0 33
  %184 = vperm.xlu0 %183, %v173
  %v185 = vpop.permute.xlu0 %184
  %186 = vset.pattern.permute.xlu0 33
  %187 = vperm.xlu0 %186, %v174
  %v188 = vpop.permute.xlu0 %187
  %vm189 = vcmp.eq.s32.totalorder %v176, %v179
  %vm190 = vcmp.eq.s32.totalorder %v176, %v182
  %vm191 = vcmp.eq.s32.totalorder %v176, %v185
  %vm192 = vcmp.eq.s32.totalorder %v176, %v188
  %v193 = vsel %vm189, 1, 0
  %v194 = vsel %vm190, 1, 0
  %v195 = vsel %vm191, 1, 0
  %v196 = vsel %vm192, 1, 0
  %v197 = vcvt.s32.f32 %v193
  %v198 = vcvt.s32.f32 %v194
  %v199 = vcvt.s32.f32 %v195
  %v200 = vcvt.s32.f32 %v196
  %v201 = vmul.f32 %v104, %v197
  %v202 = vmul.f32 %v109, %v198
  %v203 = vmul.f32 %v114, %v199
  %v204 = vmul.f32 %v119, %v200
  %v205 = vsel %vm122, %v201, 0.0
  %206 = vadd.xlane.f32.xlu0 %v205
  %v207 = vpop.xlane.xlu0 %206
  %v208 = vsel %vm122, %v202, 0.0
  %209 = vadd.xlane.f32.xlu0 %v208
  %v210 = vpop.xlane.xlu0 %209
  %v211 = vsel %vm122, %v203, 0.0
  %212 = vadd.xlane.f32.xlu0 %v211
  %v213 = vpop.xlane.xlu0 %212
  %v214 = vsel %vm122, %v204, 0.0
  %215 = vadd.xlane.f32.xlu0 %v214
  %v216 = vpop.xlane.xlu0 %215
  %v217 = vsub.f32 %v167, %v207
  %v218 = vsub.f32 %v168, %v210
  %v219 = vsub.f32 %v169, %v213
  %v220 = vsub.f32 %v170, %v216
  %v221 = vsub.f32 %v104, %v167
  %v222 = vsub.f32 %v109, %v168
  %v223 = vsub.f32 %v114, %v169
  %v224 = vsub.f32 %v119, %v170
  %v225 = vmul.f32 %v221, 1.442695
  %v226 = vpow.pop %v225
  %v227 = vmul.f32 %v222, 1.442695
  %v228 = vpow.pop %v227
  %v229 = vmul.f32 %v223, 1.442695
  %v230 = vpow.pop %v229
  %v231 = vmul.f32 %v224, 1.442695
  %v232 = vpow.pop %v231
  %v233 = vmul.f32 %v226, %v104
  %v234 = vmul.f32 %v228, %v109
  %v235 = vmul.f32 %v230, %v114
  %v236 = vmul.f32 %v232, %v119
  %v237 = vsel %vm122, %v233, 0.0
  %238 = vadd.xlane.f32.xlu0 %v237
  %v239 = vpop.xlane.xlu0 %238
  %v240 = vsel %vm122, %v234, 0.0
  %241 = vadd.xlane.f32.xlu0 %v240
  %v242 = vpop.xlane.xlu0 %241
  %v243 = vsel %vm122, %v235, 0.0
  %244 = vadd.xlane.f32.xlu0 %v243
  %v245 = vpop.xlane.xlu0 %244
  %v246 = vsel %vm122, %v236, 0.0
  %247 = vadd.xlane.f32.xlu0 %v246
  %v248 = vpop.xlane.xlu0 %247
  %v249 = vsub.f32 %v167, %v239
  %v250 = vsub.f32 %v168, %v242
  %v251 = vsub.f32 %v169, %v245
  %v252 = vsub.f32 %v170, %v248
  %vm253 = vcmask 7168
  %v254 = vsel %vm253, %v249, 0.0
  %v255 = vsel %vm253, %v250, 0.0
  %v256 = vadd.f32 %v254, %v255
  %v257 = vsel %vm253, %v251, 0.0
  %v258 = vadd.f32 %v256, %v257
  %v259 = vsel %vm253, %v252, 0.0
  %v260 = vadd.f32 %v258, %v259
  %261 = vadd.xlane.f32.xlu0 %v260
  %v262 = vpop.xlane.xlu0 %261
  %v263 = vrot.slane %v262, 4
  %v264 = vadd.f32 %v262, %v263
  %v265 = vrot.slane %v264, 2
  %v266 = vadd.f32 %v264, %v265
  %v267 = vrot.slane %v266, 1
  %v268 = vadd.f32 %v266, %v267
  %s269 = vtos %v268
  %v270 = vstv %s269
  %v271 = vmul.f32 %v270, 0.03125
  %v272 = vmul.f32 %v11, %v217
  %v273 = vmul.f32 %v12, %v218
  %v274 = vmul.f32 %v13, %v219
  %v275 = vmul.f32 %v14, %v220
  %277 = vset.pattern.permute.xlu0 34
  %278 = vperm.xlu0 %277, %v272
  %v279 = vpop.permute.xlu0 %278
  %282 = vset.pattern.permute.xlu0 34
  %283 = vperm.xlu0 %282, %v273
  %v284 = vpop.permute.xlu0 %283
  %287 = vset.pattern.permute.xlu0 34
  %288 = vperm.xlu0 %287, %v274
  %v289 = vpop.permute.xlu0 %288
  %292 = vset.pattern.permute.xlu0 34
  %293 = vperm.xlu0 %292, %v275
  %v294 = vpop.permute.xlu0 %293
  %v296 = vmul.f32 %v11, %v279
  %v297 = vmul.f32 %v12, %v284
  %v298 = vmul.f32 %v13, %v289
  %v299 = vmul.f32 %v14, %v294
  %vm300 = vcmask 318744
  %v301 = vsel %vm300, %v296, 0.0
  %v302 = vsel %vm300, %v297, 0.0
  %v303 = vadd.f32 %v301, %v302
  %v304 = vsel %vm300, %v298, 0.0
  %v305 = vadd.f32 %v303, %v304
  %v306 = vsel %vm300, %v299, 0.0
  %v307 = vadd.f32 %v305, %v306
  %v308 = vrot.slane %v307, 4
  %v309 = vadd.f32 %v307, %v308
  %v310 = vrot.slane %v309, 2
  %v311 = vadd.f32 %v309, %v310
  %v312 = vrot.slane %v311, 1
  %v313 = vadd.f32 %v311, %v312
  %314 = vset.pattern.permute.xlu0 34
  %315 = vperm.xlu0 %314, %v11
  %v316 = vpop.permute.xlu0 %315
  %318 = vset.pattern.permute.xlu0 34
  %319 = vperm.xlu0 %318, %v12
  %v320 = vpop.permute.xlu0 %319
  %322 = vset.pattern.permute.xlu0 34
  %323 = vperm.xlu0 %322, %v13
  %v324 = vpop.permute.xlu0 %323
  %326 = vset.pattern.permute.xlu0 34
  %327 = vperm.xlu0 %326, %v14
  %v328 = vpop.permute.xlu0 %327
  %v330 = vmul.f32 %v11, %v316
  %v331 = vmul.f32 %v12, %v320
  %v332 = vmul.f32 %v13, %v324
  %v333 = vmul.f32 %v14, %v328
  %v334 = vsel %vm300, %v330, 0.0
  %v335 = vsel %vm300, %v331, 0.0
  %v336 = vadd.f32 %v334, %v335
  %v337 = vsel %vm300, %v332, 0.0
  %v338 = vadd.f32 %v336, %v337
  %v339 = vsel %vm300, %v333, 0.0
  %v340 = vadd.f32 %v338, %v339
  %v341 = vrot.slane %v340, 4
  %v342 = vadd.f32 %v340, %v341
  %v343 = vrot.slane %v342, 2
  %v344 = vadd.f32 %v342, %v343
  %v345 = vrot.slane %v344, 1
  %v346 = vadd.f32 %v344, %v345
  %v347 = vrcp.pop %v346
  %v348 = vmul.f32 %v313, %v347
  %350 = vrot.lane.b32.xlu0 %v348, 93
  %v351 = vpop.permute.xlu0 %350
  %vm353 = vcmask 24576
  %v354 = vsel %vm353, %v351, 0.0
  %355 = vadd.xlane.f32.xlu0 %v354
  %v356 = vpop.xlane.xlu0 %355
  %v357 = vrot.slane %v356, 4
  %v358 = vadd.f32 %v356, %v357
  %v359 = vrot.slane %v358, 2
  %v360 = vadd.f32 %v358, %v359
  %v361 = vrot.slane %v360, 1
  %v362 = vadd.f32 %v360, %v361
  %s363 = vtos %v362
  %v364 = vstv %s363
  %v365 = vmul.f32 %v364, 0.25
  %v366 = vmul.f32 %v271, 0.01
  %v367 = vsub.f32 %v365, %v366
  %vm368 = vcmp.eq.s32.totalorder %v176, 0
  %v369 = vsel %vm368, %v367, 0.0
  %vm370 = vcmp.eq.s32.totalorder %v176, 1
  %v371 = vsel %vm370, %v365, 0.0
  %v372 = vadd.f32 %v369, %v371
  %vm373 = vcmp.eq.s32.totalorder %v176, 2
  %v374 = vsel %vm373, %v271, 0.0
  %v375 = vadd.f32 %v372, %v374
  %376 = vst [vmem:[%s2] sm:$0x1] %v375
  // Predicated region
  $region10: #{mil_calculate_loss.1} parent=0 // pred_check
    _
  $region11: #{mil_calculate_loss.1} parent=0 // pred_check_branch
    %378 = sbr.rel (0) target = $region13
  $region12: #{mil_calculate_loss.1} parent=0 // pred_region
    _
  $region13: #{mil_calculate_loss.1} parent=0 // pred_fallthru
    _
  // Predicated region
  $region14: #{mil_calculate_loss.1} parent=0 // pred_check
    _
  $region15: #{mil_calculate_loss.1} parent=0 // pred_check_branch
    %380 = sbr.rel (0) target = $region17
  $region16: #{mil_calculate_loss.1} parent=0 // pred_region
    _
  $region17: #{mil_calculate_loss.1} parent=0 // pred_fallthru
    _

</llo_original>
